<compile_context>
chip_gen: v7x
topology: tpu7x:2x2x1
jax: 0.10.0
libtpu: 0.0.40
codegen_flags: <defaults>
</compile_context>

<pallas_src>
import math

import jax
import jax.numpy as jnp
from jax.experimental import pallas as pl
from jax.experimental.pallas import tpu as pltpu


def _locked_dropout_kernel(x_ref, m_ref, o_ref):
    # x_ref: (tT, lane_blk) input tile; m_ref: (1, lane_blk) locked mask
    # (already scaled by 1/keep_prob and cast to x.dtype wrapper-side).
    o_ref[...] = x_ref[...] * m_ref[...]


def _choose_time_fold(T, BH):
    """Pick k (dividing T) so the folded lane width k*BH is a multiple of 128.

    Folding time steps into the lane axis makes the output lane-dense
    (unmasked vst instead of vst.msk into half-empty vregs) when B*H is
    narrow or not 128-aligned.
    """
    if BH % 128 == 0 or T <= 1:
        return 1
    step = 128 // math.gcd(BH, 128)
    best = 1
    for k in range(step, min(T, 4096) + 1, step):
        if T % k == 0:
            best = k
            if k * BH >= 512:          # wide enough; stop growing
                break
    return best if (best * BH) % 128 == 0 else 1


def _round_up(v, m):
    return ((v + m - 1) // m) * m


def locked_dropout(x, key, dropout=0.5, training=True, *,
                   min_pallas_bytes=1 << 20, donate_x=False):
    """Pallas equivalent of LockedDropout.forward(x, dropout).

    x:   (T, B, H) array (seq-major, like the PyTorch RNN convention).
    key: jax PRNG key used to sample the (1, B, H) locked mask.
    """
    if (not training) or dropout == 0.0:
        return x
    if dropout >= 1.0:
        # Reference would produce 0 * inf = NaN; return the only sensible
        # result (everything dropped) instead.  Documented API deviation.
        return jnp.zeros_like(x)

    keep_prob = 1.0 - dropout
    T, B, H = x.shape
    BH = B * H
    itemsize = jnp.dtype(x.dtype).itemsize

    # Locked mask: sampled once, scale computed in f32 (exact 1/keep_prob),
    # then cast so the in-kernel multiply stays in x's native precision.
    keep = jax.random.bernoulli(key, p=keep_prob, shape=(1, BH))
    mask = (keep.astype(jnp.float32) / jnp.float32(keep_prob)).astype(x.dtype)

    # Tiny inputs: a single-step grid pays launch/DMA setup overhead for a few
    # KiB of work; the fused XLA elementwise op is strictly faster.
    if T * BH * itemsize < min_pallas_bytes:
        return x * mask.reshape(1, B, H)

    # ----- layout: fold time steps into the lane axis when B*H is narrow ----
    k = _choose_time_fold(T, BH)
    rows, lane = T // k, k * BH
    x2d = x.reshape(rows, lane)                            # free, contiguous
    mask_row = jnp.tile(mask, (1, k)) if k > 1 else mask   # (1, lane)

    # ----- generation-aware VMEM budgeting ----------------------------------
    try:
        vmem_cap = int(pltpu.get_tpu_info().vmem_capacity_bytes)
    except Exception:
        vmem_cap = 64 * 1024 * 1024            # conservative (v7x per-TC size)
    vmem_limit = min(int(0.75 * vmem_cap), 96 * 1024 * 1024)
    # 2x input + 2x output double buffers (+ tiny mask) must fit the limit.
    per_buf_budget = min(8 * 1024 * 1024, max(256 * 1024, vmem_limit // 6))

    # Lane-axis tiling only if even a minimum-height (8-row) tile would blow
    # the per-buffer budget (very wide B*H).
    if 8 * lane * itemsize > per_buf_budget and lane > 128:
        lane_blk = max(128, ((per_buf_budget // (8 * itemsize)) // 128) * 128)
        lane_blk = min(lane_blk, lane)
    else:
        lane_blk = lane

    # Row tiling: as tall as the budget allows (multiple of 8), and at least
    # 2 tiles when possible so v7x's second TensorCore contributes bandwidth.
    if rows <= 8:
        tT = rows
    else:
        target_rows = max(8, (per_buf_budget // max(1, lane_blk * itemsize)) // 8 * 8)
        tT = min(max(8, (min(rows, target_rows) // 8) * 8), rows)
        half = max(8, _round_up(-(-rows // 2), 8))
        tT = min(tT, half)

    grid = (pl.cdiv(rows, tT), pl.cdiv(lane, lane_blk))

    out2d = pl.pallas_call(
        _locked_dropout_kernel,
        out_shape=jax.ShapeDtypeStruct((rows, lane), x.dtype),
        grid=grid,
        in_specs=[
            pl.BlockSpec((tT, lane_blk), lambda i, j: (i, j)),   # streamed input
            pl.BlockSpec((1, lane_blk), lambda i, j: (0, j)),    # locked mask
        ],
        out_specs=pl.BlockSpec((tT, lane_blk), lambda i, j: (i, j)),
        compiler_params=pltpu.CompilerParams(
            dimension_semantics=("parallel", "parallel"),
            vmem_limit_bytes=vmem_limit,
        ),
        input_output_aliases=({0: 0} if donate_x else {}),
    )(x2d, mask_row)

    return out2d.reshape(T, B, H)


if __name__ == "__main__":
    key = jax.random.PRNGKey(0)
    k_x, k_mask = jax.random.split(key)

    # Small shape consistent with the module's RNN usage: (seq, batch, hidden).
    T, B, H = 64, 2, 32
    x = jax.random.normal(k_x, (T, B, H), dtype=jnp.float32)

    # Force the Pallas path (min_pallas_bytes=0) so the kernel is exercised.
    out = locked_dropout(x, k_mask, dropout=0.5, training=True, min_pallas_bytes=0)
    out = jax.block_until_ready(out)
    assert out.shape == x.shape and out.dtype == x.dtype

    # Locked-dropout semantics: per-(b,h) scale is identical across all time
    # steps and equals either 0 or 1/keep_prob (= 2 here).
    ratio = out / x  # x ~ normal, effectively never exactly 0
    assert bool(jnp.allclose(ratio, ratio[0:1], atol=1e-5))
    assert bool(jnp.all(jnp.isclose(ratio[0], 0.0, atol=1e-5)
                        | jnp.isclose(ratio[0], 2.0, atol=1e-5)))

    # Pallas path matches the tiny-input jnp fallback (same key -> same mask).
    ref = locked_dropout(x, k_mask, dropout=0.5, training=True)  # fallback path
    assert bool(jnp.allclose(out, ref))

    # Eval mode / dropout=0 passthrough.
    assert bool(jnp.array_equal(
        locked_dropout(x, k_mask, dropout=0.5, training=False), x))
    assert bool(jnp.array_equal(
        locked_dropout(x, k_mask, dropout=0.0, training=True), x))

    print("KERNEL_OK")
</pallas_src>

<mosaic_0001>
module attributes {stable_mosaic.version = 11 : i64} {
  func.func @_locked_dropout_kernel(%arg0: i32, %arg1: i32, %arg2: memref<8x512xf32, #tpu.memory_space<vmem>>, %arg3: memref<1x512xf32, #tpu.memory_space<vmem>>, %arg4: memref<8x512xf32, #tpu.memory_space<vmem>>) attributes {dimension_semantics = [#tpu.dimension_semantics<parallel>, #tpu.dimension_semantics<parallel>], iteration_bounds = array<i64: 1, 1>, scalar_prefetch = 0 : i64, scratch_operands = 0 : i64, tpu.core_type = #tpu.core_type<tc>, window_params = [{transform_indices = @transform_0, window_bounds = array<i64: 8, 512>}, {transform_indices = @transform_1, window_bounds = array<i64: 1, 512>}, {transform_indices = @transform_2, window_bounds = array<i64: 8, 512>}]} {
    %c0 = arith.constant 0 : index
    %c0_0 = arith.constant 0 : index
    %0 = vector.load %arg2[%c0, %c0_0] : memref<8x512xf32, #tpu.memory_space<vmem>>, vector<8x512xf32>
    %c0_1 = arith.constant 0 : index
    %c0_2 = arith.constant 0 : index
    %1 = vector.load %arg3[%c0_1, %c0_2] : memref<1x512xf32, #tpu.memory_space<vmem>>, vector<1x512xf32>
    %2 = vector.broadcast %1 : vector<1x512xf32> to vector<8x512xf32>
    %3 = arith.mulf %0, %2 : vector<8x512xf32>
    %c0_3 = arith.constant 0 : index
    %c0_4 = arith.constant 0 : index
    %4 = vector.load %arg4[%c0_3, %c0_4] : memref<8x512xf32, #tpu.memory_space<vmem>>, vector<8x512xf32>
    tpu.vector_store %arg4[%c0_3, %c0_4], %3 {strides = array<i32>} : memref<8x512xf32, #tpu.memory_space<vmem>>, vector<8x512xf32>,
    return
  }
  func.func @transform_0(%arg0: i32, %arg1: i32) -> (i32, i32) {
    %c0_i32 = arith.constant 0 : i32
    return %arg0, %arg1 : i32, i32
  }
  func.func @transform_1(%arg0: i32, %arg1: i32) -> (i32, i32) {
    %c0_i32 = arith.constant 0 : i32
    %c0_i32_0 = arith.constant 0 : i32
    return %c0_i32, %arg1 : i32, i32
  }
  func.func @transform_2(%arg0: i32, %arg1: i32) -> (i32, i32) {
    %c0_i32 = arith.constant 0 : i32
    return %arg0, %arg1 : i32, i32
  }
}

</mosaic_0001>

<llo_original>
// kernel: tpu_custom_call.1
$region0: #{tpu_custom_call.1}
  #allocation0 [shape = 'u32[]', space=smem, size = 0x4, offset = 0x4, fixed_abs, tag = 'smem constant byte address 0x4 - core index']
  #allocation1 [shape = 'u32[144,128]{1,0:T(1,128)}', space=vmem, size = 0x12000, scoped, tag = 'internal scratch']
  %s0 = inlined_call_operand.hbm [shape: f32[8,512], index: 0, kind: input, shape index: {}]
  %s1 = inlined_call_operand.hbm [shape: f32[1,512], index: 1, kind: input, shape index: {}]
  %s2 = inlined_call_operand.hbm [shape: f32[8,512], index: 2, kind: output, shape index: {}]
  %s3 = sld [smem:[#allocation0]]
  $region26: #{tpu_custom_call.1} parent=0
    _
  %s5 = ssub.s32 1, %s3
  %s6 = scalar_select 0, %s5, %s3
  $region1: #{tpu_custom_call.1} parent=0
    #allocation2 [shape = 'u8[16384]{0}', space=vmem, size = 0x4000, scoped, tag = 'input window, operand 0, single buffered']
    #allocation3 [shape = 's32[1]{0}', space=sflag, size = 0x4, scoped, tag = 'scoped memory for tpu_custom_call.1']
    #allocation4 [shape = 's32[1]{0}', space=sflag, size = 0x4, scoped, tag = 'scoped memory for tpu_custom_call.1']
    #allocation5 [shape = 'u8[2048]{0}', space=vmem, size = 0x800, scoped, tag = 'input window, operand 1, single buffered']
    #allocation6 [shape = 's32[1]{0}', space=sflag, size = 0x4, scoped, tag = 'scoped memory for tpu_custom_call.1']
    #allocation7 [shape = 'u8[16384]{0}', space=vmem, size = 0x4000, scoped, tag = 'output window, operand 0, single buffered']
    %7 = vsyncpa [#allocation3], 0
    %8 = vsyncpa [#allocation6], 0
    %9 = vsyncpa [#allocation4], 0
    // Predicated region
    $region2: #{tpu_custom_call.1} parent=1 // pred_check
      _
    $region3: #{tpu_custom_call.1} parent=1 // pred_check_branch
      %11 = sbr.rel (0) target = $region5
    $region4: #{tpu_custom_call.1} parent=1 // pred_region
      %s13 = ssub.s32 512, 512
      %14 = vsyncadd [#allocation3], %s13
      %s16 = sshll.u32 [#allocation2], 4
      %s17 = int_to_ptr.vmem [resolvable:$true] %s16
      %19 = dma.hbm_to_vmem [thread:$0]  %s0, 512, %s17, [#allocation3]
    $region5: #{tpu_custom_call.1} parent=1 // pred_fallthru
      _
    // Predicated region
    $region6: #{tpu_custom_call.1} parent=1 // pred_check
      _
    $region7: #{tpu_custom_call.1} parent=1 // pred_check_branch
      %21 = sbr.rel (0) target = $region9
    $region8: #{tpu_custom_call.1} parent=1 // pred_region
      %s23 = ssub.s32 64, 64
      %24 = vsyncadd [#allocation6], %s23
      %s26 = sshll.u32 [#allocation5], 4
      %s27 = int_to_ptr.vmem [resolvable:$true] %s26
      %29 = dma.hbm_to_vmem [thread:$0]  %s1, 64, %s27, [#allocation6]
    $region9: #{tpu_custom_call.1} parent=1 // pred_fallthru
      _
    // Predicated region
    $region10: #{tpu_custom_call.1} parent=1 // pred_check
      _
    $region11: #{tpu_custom_call.1} parent=1 // pred_check_branch
      %31 = sbr.rel (0) target = $region13
    $region12: #{tpu_custom_call.1} parent=1 // pred_region
      %32 = dma.done [#allocation3], 512
    $region13: #{tpu_custom_call.1} parent=1 // pred_fallthru
      _
    // Predicated region
    $region14: #{tpu_custom_call.1} parent=1 // pred_check
      _
    $region15: #{tpu_custom_call.1} parent=1 // pred_check_branch
      %34 = sbr.rel (0) target = $region17
    $region16: #{tpu_custom_call.1} parent=1 // pred_region
      %35 = dma.done [#allocation6], 64
    $region17: #{tpu_custom_call.1} parent=1 // pred_fallthru
      _
    %v36 = vld [vmem:[#allocation2] sm:$0xff]
    %v37 = vld [vmem:[#allocation2 + $0x8] sm:$0xff]
    %v38 = vld [vmem:[#allocation2 + $0x10] sm:$0xff]
    %v39 = vld [vmem:[#allocation2 + $0x18] sm:$0xff]
    %v40 = vld [vmem:[#allocation5] sm:$0xf]
    %v42 = vlaneseq
    %v43 = vshrl.u32 %v42, 7
    %v44 = vsub.s32 0, %v43
    %v45 = vrot.slane %v40, %v44
    %v46 = vlaneseq
    %v47 = vshrl.u32 %v46, 7
    %v48 = vsub.s32 1, %v47
    %v49 = vrot.slane %v40, %v48
    %v50 = vlaneseq
    %v51 = vshrl.u32 %v50, 7
    %v52 = vsub.s32 2, %v51
    %v53 = vrot.slane %v40, %v52
    %v54 = vlaneseq
    %v55 = vshrl.u32 %v54, 7
    %v56 = vsub.s32 3, %v55
    %v57 = vrot.slane %v40, %v56
    %v62 = vmul.f32 %v36, %v45
    %v63 = vmul.f32 %v37, %v49
    %v64 = vmul.f32 %v38, %v53
    %v65 = vmul.f32 %v39, %v57
    %66 = vst [vmem:[#allocation7] sm:$0xff] %v62
    %67 = vst [vmem:[#allocation7 + $0x8] sm:$0xff] %v63
    %68 = vst [vmem:[#allocation7 + $0x10] sm:$0xff] %v64
    %69 = vst [vmem:[#allocation7 + $0x18] sm:$0xff] %v65
    // Predicated region
    $region18: #{tpu_custom_call.1} parent=1 // pred_check
      _
    $region19: #{tpu_custom_call.1} parent=1 // pred_check_branch
      %71 = sbr.rel (0) target = $region21
    $region20: #{tpu_custom_call.1} parent=1 // pred_region
      %s73 = ssub.s32 512, 512
      %74 = vsyncadd [#allocation4], %s73
      %s76 = sshll.u32 [#allocation7], 4
      %s77 = int_to_ptr.vmem [resolvable:$true] %s76
      %79 = dma.vmem_to_hbm [thread:$0]  %s77, 512, %s2, [#allocation4]
    $region21: #{tpu_custom_call.1} parent=1 // pred_fallthru
      _
    // Predicated region
    $region22: #{tpu_custom_call.1} parent=1 // pred_check
      _
    $region23: #{tpu_custom_call.1} parent=1 // pred_check_branch
      %81 = sbr.rel (0) target = $region25
    $region24: #{tpu_custom_call.1} parent=1 // pred_region
      %82 = dma.done [#allocation4], 512
    $region25: #{tpu_custom_call.1} parent=1 // pred_fallthru
      _
    %83 = vsyncpa [#allocation3], 1
    %84 = vsyncpa [#allocation6], 1
    %85 = vsyncpa [#allocation4], 1

</llo_original>
